<compile_context>
chip_gen: v7x
topology: tpu7x:2x2x1
jax: 0.10.0
libtpu: 0.0.40
codegen_flags: <defaults>
</compile_context>

<pallas_src>
import math

import jax
import jax.numpy as jnp
from jax import lax
from jax.experimental import pallas as pl
from jax.experimental.pallas import tpu as pltpu

_LANES = 128


def _round_up(x, m):
    return ((x + m - 1) // m) * m


def _sublane(dtype):
    # Sub-32-bit dtypes pack along sublanes: 8 rows f32, 16 bf16, 32 int8/fp8.
    return max(8, 32 // jnp.dtype(dtype).itemsize)


def _vmem_budget_and_cap():
    phys = 64 * 1024 * 1024
    try:
        phys = int(pltpu.get_tpu_info().vmem_capacity_bytes)
    except Exception:
        pass
    if phys >= 96 * 1024 * 1024:                     # v5e / v6e: 128 MiB physical VMEM
        return 96 * 1024 * 1024, 110 * 1024 * 1024
    return 40 * 1024 * 1024, 48 * 1024 * 1024        # v7x: 64 MiB per TensorCore


# --------------------------------------------------------------------------------------
# Kernels
# --------------------------------------------------------------------------------------
def _linear_kernel(x_ref, w_ref, b_ref, o_ref):
    # x_ref: (TB, D) streamed batch tile; w_ref: (D, C_pad) resident pre-transposed weight
    # b_ref: (1, C_pad) resident bias; o_ref: (TB, C_pad) lane-dense output tile
    acc = jnp.dot(x_ref[...], w_ref[...], preferred_element_type=jnp.float32)
    o_ref[...] = (acc + b_ref[...].astype(jnp.float32)).astype(o_ref.dtype)


def _make_k_tiled_kernel(D, tk, ragged):
    """K-tiled GEMM kernel: grid=(nb, nk), nk is the reduction ('arbitrary') axis."""

    def kernel(x_ref, w_ref, b_ref, o_ref, acc_ref):
        k = pl.program_id(1)

        @pl.when(k == 0)
        def _():
            acc_ref[...] = jnp.zeros_like(acc_ref)

        xv = x_ref[...]
        wv = w_ref[...]
        if ragged:  # static: D % tk != 0 -> last K block over-reads; mask the garbage
            col = k * tk + lax.broadcasted_iota(jnp.int32, xv.shape, 1)
            xv = jnp.where(col < D, xv, jnp.zeros_like(xv))
            row = k * tk + lax.broadcasted_iota(jnp.int32, wv.shape, 0)
            wv = jnp.where(row < D, wv, jnp.zeros_like(wv))

        acc_ref[...] += jnp.dot(xv, wv, preferred_element_type=jnp.float32)

        @pl.when(k == pl.num_programs(1) - 1)
        def _():
            o_ref[...] = (acc_ref[...] + b_ref[...].astype(jnp.float32)).astype(o_ref.dtype)

    return kernel


# --------------------------------------------------------------------------------------
# Parameter prep (one-time, hoisted out of the hot path)
# --------------------------------------------------------------------------------------
def prepare_classifier_params(weight, bias):
    """weight: (C, D) torch.nn.Linear layout; bias: (C,).

    Returns (w_t, b_pad, num_class): (D, C_pad) pre-transposed weight and (1, C_pad)
    bias, lane-padded to 128 so the kernel's output stores are full-width vst's.
    """
    C, D = weight.shape
    C_pad = _round_up(C, _LANES)
    w_t = jnp.zeros((D, C_pad), dtype=weight.dtype).at[:, :C].set(weight.T)
    b_pad = jnp.zeros((1, C_pad), dtype=bias.dtype).at[0, :C].set(bias)
    return w_t, b_pad, C


# --------------------------------------------------------------------------------------
# Forward wrapper
# --------------------------------------------------------------------------------------
def _logits_padded(x, w_t, b_pad, *, block_b=1024, k_tile=None):
    """Returns (B, C_pad) logits.  x is used un-padded (ragged boundary blocks)."""
    B, D = x.shape
    Dw, C_pad = w_t.shape
    assert D == Dw, "prepared weight inner dim must match x feature dim"
    out_dtype = x.dtype
    x_item = jnp.dtype(x.dtype).itemsize
    w_item = jnp.dtype(w_t.dtype).itemsize
    o_item = jnp.dtype(out_dtype).itemsize
    b_item = jnp.dtype(b_pad.dtype).itemsize
    sub = _sublane(x.dtype)
    budget, cap = _vmem_budget_and_cap()

    tb = min(block_b, _round_up(B, sub))
    tb = max(sub, _round_up(tb, sub))

    # Budget the stationary weight twice: a constant-index BlockSpec may still get
    # a second buffer, and v7x has only 64 MiB VMEM to play with.
    w_resident = 2 * D * C_pad * w_item
    bias_bytes = 2 * C_pad * b_item

    use_k = (k_tile is not None) or (w_resident > budget // 2)

    if not use_k:
        # -------- simple path: weight resident, batch streamed --------
        def need(tb_):
            return 2 * tb_ * D * x_item + 2 * tb_ * C_pad * o_item + w_resident + bias_bytes

        while need(tb) > budget and tb > sub:
            tb = max(sub, ((tb // 2) // sub) * sub)

        # v7x dual-TensorCore: make sure a large batch is split into >=2 parallel tiles.
        if pl.cdiv(B, tb) == 1 and B >= 512:
            tb = max(sub, _round_up(pl.cdiv(B, 2), sub))

        nb = pl.cdiv(B, tb)
        vmem_limit = int(min(cap, max(16 * 1024 * 1024, need(tb) + 4 * 1024 * 1024)))

        return pl.pallas_call(
            _linear_kernel,
            out_shape=jax.ShapeDtypeStruct((B, C_pad), out_dtype),
            grid_spec=pl.GridSpec(
                grid=(nb,),
                in_specs=[
                    pl.BlockSpec((tb, D), lambda i: (i, 0)),      # streamed x tiles (pipelined)
                    pl.BlockSpec((D, C_pad), lambda i: (0, 0)),   # VMEM-resident weight
                    pl.BlockSpec((1, C_pad), lambda i: (0, 0)),   # VMEM-resident bias
                ],
                out_specs=pl.BlockSpec((tb, C_pad), lambda i: (i, 0)),
            ),
            compiler_params=pltpu.CompilerParams(
                dimension_semantics=("parallel",),
                vmem_limit_bytes=vmem_limit,
            ),
        )(x, w_t, b_pad)

    # -------- K-tiled path: huge input_dim, stream both x and weight over K --------
    tk = k_tile if k_tile is not None else min(_round_up(D, _LANES), 4096)
    tk = max(_LANES, _round_up(tk, _LANES))

    def need_k(tb_, tk_):
        return (2 * tb_ * tk_ * x_item          # x stream (double-buffered)
                + 2 * tk_ * C_pad * w_item      # weight stream (double-buffered)
                + 2 * tb_ * C_pad * o_item      # output tiles
                + tb_ * C_pad * 4               # f32 accumulator scratch
                + bias_bytes)

    while need_k(tb, tk) > budget:
        if tk > _LANES:
            tk = max(_LANES, ((tk // 2) // _LANES) * _LANES)
        elif tb > sub:
            tb = max(sub, ((tb // 2) // sub) * sub)
        else:
            break

    if pl.cdiv(B, tb) == 1 and B >= 512:
        tb = max(sub, _round_up(pl.cdiv(B, 2), sub))

    nb = pl.cdiv(B, tb)
    nk = pl.cdiv(D, tk)
    ragged_k = (D % tk) != 0
    vmem_limit = int(min(cap, max(16 * 1024 * 1024, need_k(tb, tk) + 4 * 1024 * 1024)))

    kernel = _make_k_tiled_kernel(D, tk, ragged_k)
    return pl.pallas_call(
        kernel,
        out_shape=jax.ShapeDtypeStruct((B, C_pad), out_dtype),
        grid_spec=pltpu.PrefetchScalarGridSpec(
            num_scalar_prefetch=0,
            grid=(nb, nk),
            in_specs=[
                pl.BlockSpec((tb, tk), lambda i, k: (i, k)),       # x (B, K) tiles
                pl.BlockSpec((tk, C_pad), lambda i, k: (k, 0)),    # weight K tiles
                pl.BlockSpec((1, C_pad), lambda i, k: (0, 0)),     # resident bias
            ],
            out_specs=pl.BlockSpec((tb, C_pad), lambda i, k: (i, 0)),
            scratch_shapes=[pltpu.VMEM((tb, C_pad), jnp.float32)],
        ),
        compiler_params=pltpu.CompilerParams(
            dimension_semantics=("parallel", "arbitrary"),
            vmem_limit_bytes=vmem_limit,
        ),
    )(x, w_t, b_pad)


def classifier_celeba_forward(x, params, *, block_b=1024, k_tile=None):
    """Pallas version of ClassifierCelebA.forward (Linear + PyTorch .squeeze())."""
    w_t, b_pad, C = params
    out = _logits_padded(x, w_t, b_pad, block_b=block_b, k_tile=k_tile)
    return jnp.squeeze(out[:, :C])


def classifier_celeba_predict(x, params, *, block_b=1024, k_tile=None):
    """Equivalent of ClassifierCelebA.predict: argmax over the class dim (B==1 safe)."""
    w_t, b_pad, C = params
    out = _logits_padded(x, w_t, b_pad, block_b=block_b, k_tile=k_tile)
    return jnp.argmax(out[:, :C], axis=-1)


def init_classifier_params(key, input_dim, num_class=2, dtype=jnp.float32):
    """Deterministic init mimicking torch.nn.Linear defaults (uniform ±1/sqrt(fan_in))."""
    kw, kb = jax.random.split(key)
    bound = 1.0 / math.sqrt(input_dim)
    weight = jax.random.uniform(kw, (num_class, input_dim), dtype=dtype,
                                minval=-bound, maxval=bound)
    bias = jax.random.uniform(kb, (num_class,), dtype=dtype,
                              minval=-bound, maxval=bound)
    return weight, bias


if __name__ == "__main__":
    key = jax.random.PRNGKey(0)
    kx, kp = jax.random.split(key)

    batch, input_dim, num_class = 2, 32, 2
    x = jax.random.normal(kx, (batch, input_dim), dtype=jnp.float32)
    weight, bias = init_classifier_params(kp, input_dim, num_class)
    params = prepare_classifier_params(weight, bias)   # one-time prep, hoisted off hot path

    logits = classifier_celeba_forward(x, params)
    jax.block_until_ready(logits)
    ref = jnp.squeeze(x @ weight.T + bias)
    assert logits.shape == ref.shape, (logits.shape, ref.shape)
    assert jnp.allclose(logits, ref, atol=1e-5, rtol=1e-5)

    preds = classifier_celeba_predict(x, params)
    jax.block_until_ready(preds)
    assert preds.shape == (batch,)

    # Larger ragged batch: no x padding copy, partial boundary batch tile.
    xb = jax.random.normal(kx, (1000, input_dim), dtype=jnp.float32)
    logits_big = classifier_celeba_forward(xb, params)
    jax.block_until_ready(logits_big)
    ref_big = jnp.squeeze(xb @ weight.T + bias)
    assert jnp.allclose(logits_big, ref_big, atol=1e-4, rtol=1e-5)

    # Force the K-tiled (accumulator) path with ragged D to exercise it on-device.
    D3, C3 = 200, 3
    x3 = jax.random.normal(kx, (37, D3), dtype=jnp.float32)
    w3, b3 = init_classifier_params(kp, D3, C3)
    p3 = prepare_classifier_params(w3, b3)
    logits_k = classifier_celeba_forward(x3, p3, k_tile=128)
    jax.block_until_ready(logits_k)
    ref_k = jnp.squeeze(x3 @ w3.T + b3)
    assert jnp.allclose(logits_k, ref_k, atol=1e-4, rtol=1e-5)

    # TODO(synk): for tiny B*D an XLA-fused matmul beats any kernel launch; dispatch
    # heuristic left to the caller so the Pallas path stays exercised here.
    print("KERNEL_OK")
</pallas_src>

<mosaic_0001>
module attributes {stable_mosaic.version = 11 : i64} {
  func.func @_linear_kernel(%arg0: i32, %arg1: memref<8x32xf32, #tpu.memory_space<vmem>>, %arg2: memref<32x128xf32, #tpu.memory_space<vmem>>, %arg3: memref<1x128xf32, #tpu.memory_space<vmem>>, %arg4: memref<8x128xf32, #tpu.memory_space<vmem>>) attributes {dimension_semantics = [#tpu.dimension_semantics<parallel>], iteration_bounds = array<i64: 1>, scalar_prefetch = 0 : i64, scratch_operands = 0 : i64, tpu.core_type = #tpu.core_type<tc>, window_params = [{transform_indices = @transform_0, window_bounds = array<i64: 8, 32>}, {pipeline_mode = #tpu.pipeline_mode<synchronous>, transform_indices = @transform_1, window_bounds = array<i64: 32, 128>}, {pipeline_mode = #tpu.pipeline_mode<synchronous>, transform_indices = @transform_2, window_bounds = array<i64: 1, 128>}, {transform_indices = @transform_3, window_bounds = array<i64: 8, 128>}]} {
    %c0 = arith.constant 0 : index
    %c0_0 = arith.constant 0 : index
    %0 = vector.load %arg1[%c0, %c0_0] : memref<8x32xf32, #tpu.memory_space<vmem>>, vector<8x32xf32>
    %c0_1 = arith.constant 0 : index
    %c0_2 = arith.constant 0 : index
    %1 = vector.load %arg2[%c0_1, %c0_2] : memref<32x128xf32, #tpu.memory_space<vmem>>, vector<32x128xf32>
    %cst = arith.constant dense<0.000000e+00> : vector<8x128xf32>
    %2 = tpu.matmul %0, %1, %cst {dimension_numbers = #tpu.dot_dimension_numbers<[1], [0], [0], [1], [0, 0, 1, 1], [], []>} : vector<8x32xf32>, vector<32x128xf32>, vector<8x128xf32> -> vector<8x128xf32>
    %c0_3 = arith.constant 0 : index
    %c0_4 = arith.constant 0 : index
    %3 = vector.load %arg3[%c0_3, %c0_4] : memref<1x128xf32, #tpu.memory_space<vmem>>, vector<1x128xf32>
    %4 = vector.broadcast %3 : vector<1x128xf32> to vector<8x128xf32>
    %5 = arith.addf %2, %4 : vector<8x128xf32>
    %c0_5 = arith.constant 0 : index
    %c0_6 = arith.constant 0 : index
    %6 = vector.load %arg4[%c0_5, %c0_6] : memref<8x128xf32, #tpu.memory_space<vmem>>, vector<8x128xf32>
    tpu.vector_store %arg4[%c0_5, %c0_6], %5 {strides = array<i32>} : memref<8x128xf32, #tpu.memory_space<vmem>>, vector<8x128xf32>,
    return
  }
  func.func @transform_0(%arg0: i32) -> (i32, i32) {
    %c0_i32 = arith.constant 0 : i32
    %c0_i32_0 = arith.constant 0 : i32
    return %arg0, %c0_i32 : i32, i32
  }
  func.func @transform_1(%arg0: i32) -> (i32, i32) {
    %c0_i32 = arith.constant 0 : i32
    %c0_i32_0 = arith.constant 0 : i32
    %c0_i32_1 = arith.constant 0 : i32
    return %c0_i32, %c0_i32_0 : i32, i32
  }
  func.func @transform_2(%arg0: i32) -> (i32, i32) {
    %c0_i32 = arith.constant 0 : i32
    %c0_i32_0 = arith.constant 0 : i32
    %c0_i32_1 = arith.constant 0 : i32
    return %c0_i32, %c0_i32_0 : i32, i32
  }
  func.func @transform_3(%arg0: i32) -> (i32, i32) {
    %c0_i32 = arith.constant 0 : i32
    %c0_i32_0 = arith.constant 0 : i32
    return %arg0, %c0_i32 : i32, i32
  }
}

</mosaic_0001>

<llo_original>
// kernel: tpu_custom_call.1
$region0: #{tpu_custom_call.1}
  #allocation0 [shape = 'u32[]', space=smem, size = 0x4, offset = 0x4, fixed_abs, tag = 'smem constant byte address 0x4 - core index']
  #allocation1 [shape = 'u32[144,128]{1,0:T(1,128)}', space=vmem, size = 0x12000, scoped, tag = 'internal scratch']
  %s0 = inlined_call_operand.hbm [shape: f32[2,32], index: 0, kind: input, shape index: {}]
  %s1 = inlined_call_operand.hbm [shape: f32[32,128], index: 1, kind: input, shape index: {}]
  %s2 = inlined_call_operand.vmem [shape: f32[1,128], index: 2, kind: input, shape index: {}]
  %s3 = inlined_call_operand.hbm [shape: f32[2,128], index: 3, kind: output, shape index: {}]
  %s4 = sld [smem:[#allocation0]]
  $region30: #{tpu_custom_call.1} parent=0
    _
  %s6 = ssub.s32 1, %s4
  %s7 = scalar_select 0, %s6, %s4
  $region1: #{tpu_custom_call.1} parent=0
    #allocation2 [shape = 'u8[4096]{0}', space=vmem, size = 0x1000, scoped, tag = 'input window, operand 0, single buffered']
    #allocation3 [shape = 's32[1]{0}', space=sflag, size = 0x4, scoped, tag = 'scoped memory for tpu_custom_call.1']
    #allocation4 [shape = 's32[1]{0}', space=sflag, size = 0x4, scoped, tag = 'scoped memory for tpu_custom_call.1']
    #allocation5 [shape = 'u8[16384]{0}', space=vmem, size = 0x4000, scoped, tag = 'input window, operand 1, single buffered']
    #allocation6 [shape = 's32[1]{0}', space=sflag, size = 0x4, scoped, tag = 'scoped memory for tpu_custom_call.1']
    #allocation7 [shape = 'u8[4096]{0}', space=vmem, size = 0x1000, scoped, tag = 'output window, operand 0, single buffered']
    %8 = vsyncpa [#allocation3], 0
    %9 = vsyncpa [#allocation6], 0
    %10 = vsyncpa [#allocation4], 0
    // Predicated region
    $region2: #{tpu_custom_call.1} parent=1 // pred_check
      _
    $region3: #{tpu_custom_call.1} parent=1 // pred_check_branch
      %12 = sbr.rel (0) target = $region5
    $region4: #{tpu_custom_call.1} parent=1 // pred_region
      %s14 = ssub.s32 128, 32
      %15 = vsyncadd [#allocation3], %s14
      %s16 = sshll.u32 [#allocation2], 4
      %s17 = int_to_ptr.vmem [resolvable:$true] %s16
      %22 = dma.hbm_to_vmem [thread:$0]  %s0, 32, %s17, [#allocation3], 32, 32, 2
    $region5: #{tpu_custom_call.1} parent=1 // pred_fallthru
      _
    // Predicated region
    $region6: #{tpu_custom_call.1} parent=1 // pred_check
      _
    $region7: #{tpu_custom_call.1} parent=1 // pred_check_branch
      %24 = sbr.rel (0) target = $region9
    $region8: #{tpu_custom_call.1} parent=1 // pred_region
      %s26 = ssub.s32 512, 512
      %27 = vsyncadd [#allocation6], %s26
      %s28 = sshll.u32 [#allocation5], 4
      %s29 = int_to_ptr.vmem [resolvable:$true] %s28
      %34 = dma.hbm_to_vmem [thread:$0]  %s1, 512, %s29, [#allocation6], 128, 128, 8
    $region9: #{tpu_custom_call.1} parent=1 // pred_fallthru
      _
    // Predicated region
    $region10: #{tpu_custom_call.1} parent=1 // pred_check
      _
    $region11: #{tpu_custom_call.1} parent=1 // pred_check_branch
      %36 = sbr.rel (0) target = $region13
    $region12: #{tpu_custom_call.1} parent=1 // pred_region
      _
    $region13: #{tpu_custom_call.1} parent=1 // pred_fallthru
      _
    // Predicated region
    $region14: #{tpu_custom_call.1} parent=1 // pred_check
      _
    $region15: #{tpu_custom_call.1} parent=1 // pred_check_branch
      %38 = sbr.rel (0) target = $region17
    $region16: #{tpu_custom_call.1} parent=1 // pred_region
      %39 = dma.done [#allocation3], 128
    $region17: #{tpu_custom_call.1} parent=1 // pred_fallthru
      _
    // Predicated region
    $region18: #{tpu_custom_call.1} parent=1 // pred_check
      _
    $region19: #{tpu_custom_call.1} parent=1 // pred_check_branch
      %41 = sbr.rel (0) target = $region21
    $region20: #{tpu_custom_call.1} parent=1 // pred_region
      %42 = dma.done [#allocation6], 512
    $region21: #{tpu_custom_call.1} parent=1 // pred_fallthru
      _
    %v43 = vld [vmem:[#allocation2] sm:$0xff]
    %v44 = vld [vmem:[#allocation5] sm:$0xff]
    %v45 = vld [vmem:[#allocation5 + $0x8] sm:$0xff]
    %v46 = vld [vmem:[#allocation5 + $0x10] sm:$0xff]
    %v47 = vld [vmem:[#allocation5 + $0x18] sm:$0xff]
    %v48 = vld [vmem:[%s2] sm:$0x1]
    %v50 = vlaneseq
    %v51 = vshrl.u32 %v50, 7
    %v52 = vsub.s32 0, %v51
    %v53 = vrot.slane %v48, %v52
    %vm55 = vcmask 261120
    %v57 = vsel %vm55, %v43, 0
    %59 = vmatprep.subr.mxu0 0.0
    %60 = vmatpush1.msra.mxu0 %v44
    %61 = vmatprep.subr.mxu0 0.0
    %62 = vmatpush1.msra.mxu0 %v45
    %63 = vmatprep.subr.mxu0 0.0
    %64 = vmatpush1.msra.mxu0 %v46
    %65 = vmatprep.subr.mxu0 0.0
    %66 = vmatpush1.msra.mxu0 %v47
    %67 = vmatprep.subr.mxu0 0.0
    %68 = vmatpush1.msra.mxu0 0.0
    %69 = vmatprep.subr.mxu0 0.0
    %70 = vmatpush1.msra.mxu0 0.0
    %71 = vmatprep.subr.mxu0 0.0
    %72 = vmatpush1.msra.mxu0 0.0
    %73 = vmatprep.subr.mxu0 0.0
    %74 = vmatpush1.msra.mxu0 0.0
    %75 = vmatprep.subr.mxu0 0.0
    %76 = vmatpush1.msra.mxu0 0.0
    %77 = vmatprep.subr.mxu0 0.0
    %78 = vmatpush1.msra.mxu0 0.0
    %79 = vmatprep.subr.mxu0 0.0
    %80 = vmatpush1.msra.mxu0 0.0
    %81 = vmatprep.subr.mxu0 0.0
    %82 = vmatpush1.msra.mxu0 0.0
    %83 = vmatprep.subr.mxu0 0.0
    %84 = vmatpush1.msra.mxu0 0.0
    %85 = vmatprep.subr.mxu0 0.0
    %86 = vmatpush1.msra.mxu0 0.0
    %87 = vmatprep.subr.mxu0 0.0
    %88 = vmatpush1.msra.mxu0 0.0
    %89 = vmatprep.subr.mxu0 0.0
    %90 = vmatpush1.msra.mxu0 0.0
    %91 = vmatprep.subr.mxu0 0.0
    %92 = vmatpush1.msra.mxu0 0.0
    %93 = vmatprep.subr.mxu0 0.0
    %94 = vmatpush1.msra.mxu0 0.0
    %95 = vmatprep.subr.mxu0 0.0
    %96 = vmatpush1.msra.mxu0 0.0
    %97 = vmatprep.subr.mxu0 0.0
    %98 = vmatpush1.msra.mxu0 0.0
    %99 = vmatprep.subr.mxu0 0.0
    %100 = vmatpush1.msra.mxu0 0.0
    %101 = vmatprep.subr.mxu0 0.0
    %102 = vmatpush1.msra.mxu0 0.0
    %103 = vmatprep.subr.mxu0 0.0
    %104 = vmatpush1.msra.mxu0 0.0
    %105 = vmatprep.subr.mxu0 0.0
    %106 = vmatpush1.msra.mxu0 0.0
    %107 = vmatprep.subr.mxu0 0.0
    %108 = vmatpush1.msra.mxu0 0.0
    %109 = vmatprep.subr.mxu0 0.0
    %110 = vmatpush1.msra.mxu0 0.0
    %111 = vmatprep.subr.mxu0 0.0
    %112 = vmatpush1.msra.mxu0 0.0
    %113 = vmatprep.subr.mxu0 0.0
    %114 = vmatpush1.msra.mxu0 0.0
    %115 = vmatprep.subr.mxu0 0.0
    %116 = vmatpush1.msra.mxu0 0.0
    %117 = vmatprep.subr.mxu0 0.0
    %118 = vmatpush1.msra.mxu0 0.0
    %119 = vmatprep.subr.mxu0 0.0
    %120 = vmatpush1.msra.mxu0 0.0
    %121 = vmatprep.subr.mxu0 0.0
    %122 = vmatpush1.msra.mxu0 0.0
    %123 = vmatprep.mubr.f32.mxu0 0.0
    %124 = vmatmul.mubr.f32.gmra.mrb[0].mxu0 %v57
    %v125 = vpop.f32.mrb[0].mxu0
    %v126 = vadd.f32 %v53, %v125
    %v127 = vpop.f32.mrb[0].mxu0
    %128 = vdwg.mxu0
    %129 = vst [vmem:[#allocation7] sm:$0xff] %v126
    // Predicated region
    $region22: #{tpu_custom_call.1} parent=1 // pred_check
      _
    $region23: #{tpu_custom_call.1} parent=1 // pred_check_branch
      %131 = sbr.rel (0) target = $region25
    $region24: #{tpu_custom_call.1} parent=1 // pred_region
      %s133 = ssub.s32 128, 32
      %134 = vsyncadd [#allocation4], %s133
      %s135 = sshll.u32 [#allocation7], 4
      %s136 = int_to_ptr.vmem [resolvable:$true] %s135
      %141 = dma.vmem_to_hbm [thread:$0]  %s136, 32, %s3, [#allocation4], 32, 32, 2
    $region25: #{tpu_custom_call.1} parent=1 // pred_fallthru
      _
    // Predicated region
    $region26: #{tpu_custom_call.1} parent=1 // pred_check
      _
    $region27: #{tpu_custom_call.1} parent=1 // pred_check_branch
      %143 = sbr.rel (0) target = $region29
    $region28: #{tpu_custom_call.1} parent=1 // pred_region
      %144 = dma.done [#allocation4], 128
    $region29: #{tpu_custom_call.1} parent=1 // pred_fallthru
      _
    %145 = vsyncpa [#allocation3], 1
    %146 = vsyncpa [#allocation6], 1
    %147 = vsyncpa [#allocation4], 1

</llo_original>
